<compile_context>
chip_gen: v5e
topology: v5e:2x2
jax: 0.10.0
libtpu: 0.0.40
codegen_flags: <defaults>
</compile_context>

<pallas_src>
import jax
import jax.numpy as jnp
from jax.experimental import pallas as pl
from jax.experimental.pallas import tpu as pltpu


# ----------------------------------------------------------------------------
# Pallas kernel: whole batch tile per grid step, 4 matmuls total.
# ----------------------------------------------------------------------------
def cnn_kernel(x_ref, w1_ref, b1_ref, w2_ref, b2_ref, w3_ref, b3_ref,
               wfc_ref, bfc_ref, out_ref):
    mxu_dtype = w1_ref.dtype

    def layer(h, w_ref, b_ref, relu):
        # (B, Din) @ (Din, Dout) on the MXU, f32 accumulation.
        acc = jnp.dot(h, w_ref[...], preferred_element_type=jnp.float32)
        acc = acc + b_ref[...]                 # f32 bias add (VPU)
        if relu:
            acc = jnp.maximum(acc, 0.0)        # f32 ReLU (VPU)
        return acc

    h = layer(x_ref[...], w1_ref, b1_ref, True).astype(mxu_dtype)   # (B, L1*C1)
    h = layer(h, w2_ref, b2_ref, True).astype(mxu_dtype)            # (B, L2*C2)
    h = layer(h, w3_ref, b3_ref, True).astype(mxu_dtype)            # (B, L3*C3)
    out_ref[...] = layer(h, wfc_ref, bfc_ref, False).astype(out_ref.dtype)


# ----------------------------------------------------------------------------
# Wrapper: parameter re-layout (glue, wrapper-side only) + pallas_call
# ----------------------------------------------------------------------------
def _round_up(x, m):
    return (x + m - 1) // m * m


def _conv_band_matrix(w, l_in):
    """Expand a Conv1d weight (Cout, Cin, K) into a block-banded
    (l_in*Cin, l_out*Cout) matrix acting on channels-last flattened
    activations (lane index = position*C + channel); VALID padding, stride 1."""
    cout, cin, k = w.shape
    l_out = l_in - k + 1
    wt = jnp.transpose(w, (2, 1, 0)).astype(jnp.float32)     # (K, Cin, Cout)
    big = jnp.zeros((l_in * cin, l_out * cout), jnp.float32)
    for l in range(l_out):
        for kk in range(k):
            big = big.at[(l + kk) * cin:(l + kk + 1) * cin,
                         l * cout:(l + 1) * cout].set(wt[kk])
    return big


def cnn_forward(x_ncl, params, *, mxu_dtype=jnp.float32, max_batch_tile=128):
    (w1, b1), (w2, b2), (w3, b3), (wfc, bfc) = params

    n, cin, length = x_ncl.shape
    c1, c2, c3 = w1.shape[0], w2.shape[0], w3.shape[0]
    k = w1.shape[2]
    l1 = length - k + 1
    l2 = l1 - k + 1
    l3 = l2 - k + 1
    n_out = wfc.shape[0]
    lane_out = _round_up(n_out, 128)          # lane-dense padded output width

    # ---- layout glue (outside the kernel) ----------------------------------
    # activations: NCL -> channels-last flattened (N, L*Cin), lane = l*Cin + c
    x_flat = jnp.transpose(x_ncl, (0, 2, 1)).reshape(n, length * cin)

    # batch tiling: pad N up to a multiple of 8; tile at most max_batch_tile
    b_tile = min(_round_up(n, 8), max_batch_tile)
    n_pad = _round_up(n, b_tile)
    x_flat = jnp.pad(x_flat, ((0, n_pad - n), (0, 0))).astype(mxu_dtype)

    # conv weights -> block-banded single-matmul form (bf16 at MXU optional)
    w1p = _conv_band_matrix(w1, length).astype(mxu_dtype)    # (L*Cin,  L1*C1)
    w2p = _conv_band_matrix(w2, l1).astype(mxu_dtype)        # (L1*C1,  L2*C2)
    w3p = _conv_band_matrix(w3, l2).astype(mxu_dtype)        # (L2*C2,  L3*C3)
    b1p = jnp.tile(b1.astype(jnp.float32), l1).reshape(1, l1 * c1)
    b2p = jnp.tile(b2.astype(jnp.float32), l2).reshape(1, l2 * c2)
    b3p = jnp.tile(b3.astype(jnp.float32), l3).reshape(1, l3 * c3)

    # fc weight: torch flatten index is c*L3 + l ; kernel lane index is l*C3+c
    wfcp = jnp.transpose(wfc.reshape(n_out, c3, l3), (2, 1, 0)).reshape(l3 * c3, n_out)
    wfcp = jnp.pad(wfcp, ((0, 0), (0, lane_out - n_out))).astype(mxu_dtype)
    bfcp = jnp.pad(bfc.reshape(1, n_out).astype(jnp.float32),
                   ((0, 0), (0, lane_out - n_out)))

    const2d = lambda i: (0, 0)                # weights resident across steps
    out = pl.pallas_call(
        cnn_kernel,
        out_shape=jax.ShapeDtypeStruct((n_pad, lane_out), jnp.float32),
        grid=(n_pad // b_tile,),
        in_specs=[
            pl.BlockSpec((b_tile, length * cin), lambda i: (i, 0)),
            pl.BlockSpec(w1p.shape, const2d), pl.BlockSpec(b1p.shape, const2d),
            pl.BlockSpec(w2p.shape, const2d), pl.BlockSpec(b2p.shape, const2d),
            pl.BlockSpec(w3p.shape, const2d), pl.BlockSpec(b3p.shape, const2d),
            pl.BlockSpec(wfcp.shape, const2d), pl.BlockSpec(bfcp.shape, const2d),
        ],
        out_specs=pl.BlockSpec((b_tile, lane_out), lambda i: (i, 0)),
        compiler_params=pltpu.CompilerParams(
            dimension_semantics=("parallel",)),
    )(x_flat, w1p, b1p, w2p, b2p, w3p, b3p, wfcp, bfcp)

    return out[:n, :n_out]


# ----------------------------------------------------------------------------
# Pure-JAX reference (mirrors the PyTorch forward, NCL layout).  `mxu_dtype`
# applies the same cast-at-MXU-inputs / f32-accumulation policy as the kernel.
# ----------------------------------------------------------------------------
def ref_forward(x_ncl, params, mxu_dtype=jnp.float32):
    (w1, b1), (w2, b2), (w3, b3), (wfc, bfc) = params

    def conv1d(x, w, b):
        y = jax.lax.conv_general_dilated(
            x.astype(mxu_dtype), w.astype(mxu_dtype),
            window_strides=(1,), padding="VALID",
            dimension_numbers=("NCH", "OIH", "NCH"),
            preferred_element_type=jnp.float32)
        return y + b[None, :, None].astype(jnp.float32)

    x = x_ncl.astype(jnp.float32)
    h = jax.nn.relu(conv1d(x, w1, b1))
    h = jax.nn.relu(conv1d(h, w2, b2))
    h = jax.nn.relu(conv1d(h, w3, b3))
    flat = h.reshape(h.shape[0], -1)          # (N, C3*L3), channel-major
    return jnp.dot(flat.astype(mxu_dtype), wfc.T.astype(mxu_dtype),
                   preferred_element_type=jnp.float32) + bfc


# ----------------------------------------------------------------------------
# Main
# ----------------------------------------------------------------------------
if __name__ == "__main__":
    # Module config (CAT_encode=False): Conv1d(4, c1, 3) -> Conv1d(c1, c2, 3)
    # -> Conv1d(c2, c3, 3) -> Linear(out_dim*c3, 9)
    input_len = 16
    cin = 4
    conv1_hu, conv2_hu, conv3_hu = 8, 8, 8
    batch = 2
    out_dim = input_len - 2 - 2 - 2           # 10
    n_classes = 9

    key = jax.random.PRNGKey(0)
    ks = jax.random.split(key, 9)
    scale = 0.1
    w1 = scale * jax.random.normal(ks[0], (conv1_hu, cin, 3), jnp.float32)
    b1 = scale * jax.random.normal(ks[1], (conv1_hu,), jnp.float32)
    w2 = scale * jax.random.normal(ks[2], (conv2_hu, conv1_hu, 3), jnp.float32)
    b2 = scale * jax.random.normal(ks[3], (conv3_hu, conv2_hu, 3)[0:1] + (conv1_hu,))[:, 0] if False else scale * jax.random.normal(ks[3], (conv2_hu,), jnp.float32)
    w3 = scale * jax.random.normal(ks[4], (conv3_hu, conv2_hu, 3), jnp.float32)
    b3 = scale * jax.random.normal(ks[5], (conv3_hu,), jnp.float32)
    wfc = scale * jax.random.normal(ks[6], (n_classes, out_dim * conv3_hu), jnp.float32)
    bfc = scale * jax.random.normal(ks[7], (n_classes,), jnp.float32)
    params = ((w1, b1), (w2, b2), (w3, b3), (wfc, bfc))

    x = jax.random.normal(ks[8], (batch, cin, input_len), jnp.float32)  # NCL

    fwd = jax.jit(cnn_forward, static_argnames=("mxu_dtype", "max_batch_tile"))

    # f32-everywhere path (exact mirror of the PyTorch forward).
    out_f32 = jax.block_until_ready(fwd(x, params, mxu_dtype=jnp.float32))
    ref_f32 = jax.block_until_ready(ref_forward(x, params, jnp.float32))
    assert out_f32.shape == (batch, n_classes), out_f32.shape
    assert jnp.allclose(out_f32, ref_f32, atol=5e-4, rtol=5e-4), (out_f32, ref_f32)

    # bf16-at-MXU path (f32 accumulation / bias / ReLU) — v6e/v7x throughput.
    out_bf16 = jax.block_until_ready(fwd(x, params, mxu_dtype=jnp.bfloat16))
    ref_bf16 = jax.block_until_ready(ref_forward(x, params, jnp.bfloat16))
    assert jnp.allclose(out_bf16, ref_bf16, atol=5e-3, rtol=5e-3), (out_bf16, ref_bf16)

    print("KERNEL_OK")
</pallas_src>

<mosaic_0001>
module attributes {stable_mosaic.version = 11 : i64} {
  func.func @cnn_kernel(%arg0: i32, %arg1: memref<8x64xf32, #tpu.memory_space<vmem>>, %arg2: memref<64x112xf32, #tpu.memory_space<vmem>>, %arg3: memref<1x112xf32, #tpu.memory_space<vmem>>, %arg4: memref<112x96xf32, #tpu.memory_space<vmem>>, %arg5: memref<1x96xf32, #tpu.memory_space<vmem>>, %arg6: memref<96x80xf32, #tpu.memory_space<vmem>>, %arg7: memref<1x80xf32, #tpu.memory_space<vmem>>, %arg8: memref<80x128xf32, #tpu.memory_space<vmem>>, %arg9: memref<1x128xf32, #tpu.memory_space<vmem>>, %arg10: memref<8x128xf32, #tpu.memory_space<vmem>>) attributes {dimension_semantics = [#tpu.dimension_semantics<parallel>], iteration_bounds = array<i64: 1>, scalar_prefetch = 0 : i64, scratch_operands = 0 : i64, tpu.core_type = #tpu.core_type<tc>, window_params = [{transform_indices = @transform_0, window_bounds = array<i64: 8, 64>}, {pipeline_mode = #tpu.pipeline_mode<synchronous>, transform_indices = @transform_1, window_bounds = array<i64: 64, 112>}, {pipeline_mode = #tpu.pipeline_mode<synchronous>, transform_indices = @transform_2, window_bounds = array<i64: 1, 112>}, {pipeline_mode = #tpu.pipeline_mode<synchronous>, transform_indices = @transform_3, window_bounds = array<i64: 112, 96>}, {pipeline_mode = #tpu.pipeline_mode<synchronous>, transform_indices = @transform_4, window_bounds = array<i64: 1, 96>}, {pipeline_mode = #tpu.pipeline_mode<synchronous>, transform_indices = @transform_5, window_bounds = array<i64: 96, 80>}, {pipeline_mode = #tpu.pipeline_mode<synchronous>, transform_indices = @transform_6, window_bounds = array<i64: 1, 80>}, {pipeline_mode = #tpu.pipeline_mode<synchronous>, transform_indices = @transform_7, window_bounds = array<i64: 80, 128>}, {pipeline_mode = #tpu.pipeline_mode<synchronous>, transform_indices = @transform_8, window_bounds = array<i64: 1, 128>}, {transform_indices = @transform_9, window_bounds = array<i64: 8, 128>}]} {
    %c0 = arith.constant 0 : index
    %c0_0 = arith.constant 0 : index
    %0 = vector.load %arg1[%c0, %c0_0] : memref<8x64xf32, #tpu.memory_space<vmem>>, vector<8x64xf32>
    %c0_1 = arith.constant 0 : index
    %c0_2 = arith.constant 0 : index
    %1 = vector.load %arg2[%c0_1, %c0_2] : memref<64x112xf32, #tpu.memory_space<vmem>>, vector<64x112xf32>
    %cst = arith.constant dense<0.000000e+00> : vector<8x112xf32>
    %2 = tpu.matmul %0, %1, %cst {dimension_numbers = #tpu.dot_dimension_numbers<[1], [0], [0], [1], [0, 0, 1, 1], [], []>} : vector<8x64xf32>, vector<64x112xf32>, vector<8x112xf32> -> vector<8x112xf32>
    %c0_3 = arith.constant 0 : index
    %c0_4 = arith.constant 0 : index
    %3 = vector.load %arg3[%c0_3, %c0_4] : memref<1x112xf32, #tpu.memory_space<vmem>>, vector<1x112xf32>
    %4 = vector.broadcast %3 : vector<1x112xf32> to vector<8x112xf32>
    %5 = arith.addf %2, %4 : vector<8x112xf32>
    %cst_5 = arith.constant 0.000000e+00 : f32
    %6 = vector.broadcast %cst_5 : f32 to vector<8x112xf32>
    %7 = arith.maximumf %5, %6 : vector<8x112xf32>
    %c0_6 = arith.constant 0 : index
    %c0_7 = arith.constant 0 : index
    %8 = vector.load %arg4[%c0_6, %c0_7] : memref<112x96xf32, #tpu.memory_space<vmem>>, vector<112x96xf32>
    %cst_8 = arith.constant dense<0.000000e+00> : vector<8x96xf32>
    %9 = tpu.matmul %7, %8, %cst_8 {dimension_numbers = #tpu.dot_dimension_numbers<[1], [0], [0], [1], [0, 0, 1, 1], [], []>} : vector<8x112xf32>, vector<112x96xf32>, vector<8x96xf32> -> vector<8x96xf32>
    %c0_9 = arith.constant 0 : index
    %c0_10 = arith.constant 0 : index
    %10 = vector.load %arg5[%c0_9, %c0_10] : memref<1x96xf32, #tpu.memory_space<vmem>>, vector<1x96xf32>
    %11 = vector.broadcast %10 : vector<1x96xf32> to vector<8x96xf32>
    %12 = arith.addf %9, %11 : vector<8x96xf32>
    %cst_11 = arith.constant 0.000000e+00 : f32
    %13 = vector.broadcast %cst_11 : f32 to vector<8x96xf32>
    %14 = arith.maximumf %12, %13 : vector<8x96xf32>
    %c0_12 = arith.constant 0 : index
    %c0_13 = arith.constant 0 : index
    %15 = vector.load %arg6[%c0_12, %c0_13] : memref<96x80xf32, #tpu.memory_space<vmem>>, vector<96x80xf32>
    %cst_14 = arith.constant dense<0.000000e+00> : vector<8x80xf32>
    %16 = tpu.matmul %14, %15, %cst_14 {dimension_numbers = #tpu.dot_dimension_numbers<[1], [0], [0], [1], [0, 0, 1, 1], [], []>} : vector<8x96xf32>, vector<96x80xf32>, vector<8x80xf32> -> vector<8x80xf32>
    %c0_15 = arith.constant 0 : index
    %c0_16 = arith.constant 0 : index
    %17 = vector.load %arg7[%c0_15, %c0_16] : memref<1x80xf32, #tpu.memory_space<vmem>>, vector<1x80xf32>
    %18 = vector.broadcast %17 : vector<1x80xf32> to vector<8x80xf32>
    %19 = arith.addf %16, %18 : vector<8x80xf32>
    %cst_17 = arith.constant 0.000000e+00 : f32
    %20 = vector.broadcast %cst_17 : f32 to vector<8x80xf32>
    %21 = arith.maximumf %19, %20 : vector<8x80xf32>
    %c0_18 = arith.constant 0 : index
    %c0_19 = arith.constant 0 : index
    %22 = vector.load %arg8[%c0_18, %c0_19] : memref<80x128xf32, #tpu.memory_space<vmem>>, vector<80x128xf32>
    %cst_20 = arith.constant dense<0.000000e+00> : vector<8x128xf32>
    %23 = tpu.matmul %21, %22, %cst_20 {dimension_numbers = #tpu.dot_dimension_numbers<[1], [0], [0], [1], [0, 0, 1, 1], [], []>} : vector<8x80xf32>, vector<80x128xf32>, vector<8x128xf32> -> vector<8x128xf32>
    %c0_21 = arith.constant 0 : index
    %c0_22 = arith.constant 0 : index
    %24 = vector.load %arg9[%c0_21, %c0_22] : memref<1x128xf32, #tpu.memory_space<vmem>>, vector<1x128xf32>
    %25 = vector.broadcast %24 : vector<1x128xf32> to vector<8x128xf32>
    %26 = arith.addf %23, %25 : vector<8x128xf32>
    %c0_23 = arith.constant 0 : index
    %c0_24 = arith.constant 0 : index
    %27 = vector.load %arg10[%c0_23, %c0_24] : memref<8x128xf32, #tpu.memory_space<vmem>>, vector<8x128xf32>
    tpu.vector_store %arg10[%c0_23, %c0_24], %26 {strides = array<i32>} : memref<8x128xf32, #tpu.memory_space<vmem>>, vector<8x128xf32>,
    return
  }
  func.func @transform_0(%arg0: i32) -> (i32, i32) {
    %c0_i32 = arith.constant 0 : i32
    %c0_i32_0 = arith.constant 0 : i32
    return %arg0, %c0_i32 : i32, i32
  }
  func.func @transform_1(%arg0: i32) -> (i32, i32) {
    %c0_i32 = arith.constant 0 : i32
    %c0_i32_0 = arith.constant 0 : i32
    %c0_i32_1 = arith.constant 0 : i32
    return %c0_i32, %c0_i32_0 : i32, i32
  }
  func.func @transform_2(%arg0: i32) -> (i32, i32) {
    %c0_i32 = arith.constant 0 : i32
    %c0_i32_0 = arith.constant 0 : i32
    %c0_i32_1 = arith.constant 0 : i32
    return %c0_i32, %c0_i32_0 : i32, i32
  }
  func.func @transform_3(%arg0: i32) -> (i32, i32) {
    %c0_i32 = arith.constant 0 : i32
    %c0_i32_0 = arith.constant 0 : i32
    %c0_i32_1 = arith.constant 0 : i32
    return %c0_i32, %c0_i32_0 : i32, i32
  }
  func.func @transform_4(%arg0: i32) -> (i32, i32) {
    %c0_i32 = arith.constant 0 : i32
    %c0_i32_0 = arith.constant 0 : i32
    %c0_i32_1 = arith.constant 0 : i32
    return %c0_i32, %c0_i32_0 : i32, i32
  }
  func.func @transform_5(%arg0: i32) -> (i32, i32) {
    %c0_i32 = arith.constant 0 : i32
    %c0_i32_0 = arith.constant 0 : i32
    %c0_i32_1 = arith.constant 0 : i32
    return %c0_i32, %c0_i32_0 : i32, i32
  }
  func.func @transform_6(%arg0: i32) -> (i32, i32) {
    %c0_i32 = arith.constant 0 : i32
    %c0_i32_0 = arith.constant 0 : i32
    %c0_i32_1 = arith.constant 0 : i32
    return %c0_i32, %c0_i32_0 : i32, i32
  }
  func.func @transform_7(%arg0: i32) -> (i32, i32) {
    %c0_i32 = arith.constant 0 : i32
    %c0_i32_0 = arith.constant 0 : i32
    %c0_i32_1 = arith.constant 0 : i32
    return %c0_i32, %c0_i32_0 : i32, i32
  }
  func.func @transform_8(%arg0: i32) -> (i32, i32) {
    %c0_i32 = arith.constant 0 : i32
    %c0_i32_0 = arith.constant 0 : i32
    %c0_i32_1 = arith.constant 0 : i32
    return %c0_i32, %c0_i32_0 : i32, i32
  }
  func.func @transform_9(%arg0: i32) -> (i32, i32) {
    %c0_i32 = arith.constant 0 : i32
    %c0_i32_0 = arith.constant 0 : i32
    return %arg0, %c0_i32 : i32, i32
  }
}

</mosaic_0001>

<llo_original>
// kernel: tile.19
$region0: #{tile.19}
  %s0 = inlined_call_operand.vmem [shape: f32[14,8], index: 0, kind: input, shape index: {}]
  %s1 = inlined_call_operand.vmem [shape: f32[1,112], index: 1, kind: output, shape index: {}]
  $region1: #{tile.19} parent=0
    #allocation0 [shape = 'u8[4096]{0}', space=vmem, size = 0x1000, scoped, tag = 'scoped mem for output reshape']
    %v2 = vld [vmem:[%s0] sm:$0x1]
    %vm3 = vcmask 64512
    %4 = vst.msk [vmem:[#allocation0] sm:$0x1] %vm3, %v2
    %s5 = scalar_lea.vmem %s0, 13
    %v6 = vld [vmem:[%s5] sm:$0x1]
    %7 = vrot.lane.b32.xlu0 %v6, 104
    %v8 = vpop.permute.xlu0 %7
    %vm9 = vcmask 917312
    %10 = vst.msk [vmem:[#allocation0] sm:$0x1] %vm9, %v8
    %s11 = scalar_lea.vmem %s0, 12
    %v12 = vld [vmem:[%s11] sm:$0x1]
    %13 = vrot.lane.b32.xlu0 %v12, 96
    %v14 = vpop.permute.xlu0 %13
    %vm15 = vcmask 851712
    %16 = vst.msk [vmem:[#allocation0] sm:$0x1] %vm15, %v14
    %s17 = scalar_lea.vmem %s0, 11
    %v18 = vld [vmem:[%s17] sm:$0x1]
    %19 = vrot.lane.b32.xlu0 %v18, 88
    %v20 = vpop.permute.xlu0 %19
    %vm21 = vcmask 786112
    %22 = vst.msk [vmem:[#allocation0] sm:$0x1] %vm21, %v20
    %s23 = scalar_lea.vmem %s0, 10
    %v24 = vld [vmem:[%s23] sm:$0x1]
    %25 = vrot.lane.b32.xlu0 %v24, 80
    %v26 = vpop.permute.xlu0 %25
    %vm27 = vcmask 720512
    %28 = vst.msk [vmem:[#allocation0] sm:$0x1] %vm27, %v26
    %s29 = scalar_lea.vmem %s0, 9
    %v30 = vld [vmem:[%s29] sm:$0x1]
    %31 = vrot.lane.b32.xlu0 %v30, 72
    %v32 = vpop.permute.xlu0 %31
    %vm33 = vcmask 654912
    %34 = vst.msk [vmem:[#allocation0] sm:$0x1] %vm33, %v32
    %s35 = scalar_lea.vmem %s0, 8
    %v36 = vld [vmem:[%s35] sm:$0x1]
    %37 = vrot.lane.b32.xlu0 %v36, 64
    %v38 = vpop.permute.xlu0 %37
    %vm39 = vcmask 589312
    %40 = vst.msk [vmem:[#allocation0] sm:$0x1] %vm39, %v38
    %s41 = scalar_lea.vmem %s0, 7
    %v42 = vld [vmem:[%s41] sm:$0x1]
    %43 = vrot.lane.b32.xlu0 %v42, 56
    %v44 = vpop.permute.xlu0 %43
    %vm45 = vcmask 523712
    %46 = vst.msk [vmem:[#allocation0] sm:$0x1] %vm45, %v44
    %s47 = scalar_lea.vmem %s0, 6
    %v48 = vld [vmem:[%s47] sm:$0x1]
    %49 = vrot.lane.b32.xlu0 %v48, 48
    %v50 = vpop.permute.xlu0 %49
    %vm51 = vcmask 458112
    %52 = vst.msk [vmem:[#allocation0] sm:$0x1] %vm51, %v50
    %s53 = scalar_lea.vmem %s0, 5
    %v54 = vld [vmem:[%s53] sm:$0x1]
    %55 = vrot.lane.b32.xlu0 %v54, 40
    %v56 = vpop.permute.xlu0 %55
    %vm57 = vcmask 392512
    %58 = vst.msk [vmem:[#allocation0] sm:$0x1] %vm57, %v56
    %s59 = scalar_lea.vmem %s0, 4
    %v60 = vld [vmem:[%s59] sm:$0x1]
    %61 = vrot.lane.b32.xlu0 %v60, 32
    %v62 = vpop.permute.xlu0 %61
    %vm63 = vcmask 326912
    %64 = vst.msk [vmem:[#allocation0] sm:$0x1] %vm63, %v62
    %s65 = scalar_lea.vmem %s0, 3
    %v66 = vld [vmem:[%s65] sm:$0x1]
    %67 = vrot.lane.b32.xlu0 %v66, 24
    %v68 = vpop.permute.xlu0 %67
    %vm69 = vcmask 261312
    %70 = vst.msk [vmem:[#allocation0] sm:$0x1] %vm69, %v68
    %s71 = scalar_lea.vmem %s0, 2
    %v72 = vld [vmem:[%s71] sm:$0x1]
    %73 = vrot.lane.b32.xlu0 %v72, 16
    %v74 = vpop.permute.xlu0 %73
    %vm75 = vcmask 195712
    %76 = vst.msk [vmem:[#allocation0] sm:$0x1] %vm75, %v74
    %s77 = scalar_lea.vmem %s0, 1
    %v78 = vld [vmem:[%s77] sm:$0x1]
    %79 = vrot.lane.b32.xlu0 %v78, 8
    %v80 = vpop.permute.xlu0 %79
    %vm81 = vcmask 130112
    %82 = vst.msk [vmem:[#allocation0] sm:$0x1] %vm81, %v80
    %s84 = ssub.s32 2, 1
    %v85 = vld [vmem:[#allocation0] sm:%s84]
    %s87 = ssub.s32 2, 1
    %88 = vst [vmem:[%s1] sm:%s87] %v85

// kernel: tile.18
$region0: #{tile.18}
  #allocation0 [shape = 's32[1]{0}', space=sflag, size = 0x4, scoped, tag = 'scoped memory for tile.18']
  %s0 = inlined_call_operand.vmem [shape: f32[8], index: 0, kind: input, shape index: {}]
  %s1 = inlined_call_operand.vmem [shape: f32[14,8], index: 1, kind: output, shape index: {}]
  // Predicated region
  $region2: #{tile.18} parent=0 // pred_check
    _
  $region3: #{tile.18} parent=0 // pred_check_branch
    %3 = sbr.rel (0) target = $region5
  $region4: #{tile.18} parent=0 // pred_region
    _
  $region5: #{tile.18} parent=0 // pred_fallthru
    _
  %v4 = vld [vmem:[%s0] ss:$0 sm:$0xff]
  %5 = vst [vmem:[%s1] sm:$0xff] %v4
  %s6 = scalar_lea.vmem %s1, 8
  %7 = vst [vmem:[%s6] sm:$0xff] %v4

// kernel: tile.23
$region0: #{tile.23}
  #allocation0 [shape = 's32[1]{0}', space=sflag, size = 0x4, scoped, tag = 'scoped memory for tile.23']
  %s0 = inlined_call_operand.vmem [shape: f32[8], index: 0, kind: input, shape index: {}]
  %s1 = inlined_call_operand.vmem [shape: f32[12,8], index: 1, kind: output, shape index: {}]
  // Predicated region
  $region2: #{tile.23} parent=0 // pred_check
    _
  $region3: #{tile.23} parent=0 // pred_check_branch
    %3 = sbr.rel (0) target = $region5
  $region4: #{tile.23} parent=0 // pred_region
    _
  $region5: #{tile.23} parent=0 // pred_fallthru
    _
  %v4 = vld [vmem:[%s0] ss:$0 sm:$0xff]
  %5 = vst [vmem:[%s1] sm:$0xff] %v4
  %s6 = scalar_lea.vmem %s1, 8
  %7 = vst [vmem:[%s6] sm:$0xff] %v4

// kernel: tile.24
$region0: #{tile.24}
  %s0 = inlined_call_operand.vmem [shape: f32[12,8], index: 0, kind: input, shape index: {}]
  %s1 = inlined_call_operand.vmem [shape: f32[1,96], index: 1, kind: output, shape index: {}]
  $region1: #{tile.24} parent=0
    #allocation0 [shape = 'u8[4096]{0}', space=vmem, size = 0x1000, scoped, tag = 'scoped mem for output reshape']
    %v2 = vld [vmem:[%s0] sm:$0x1]
    %vm3 = vcmask 64512
    %4 = vst.msk [vmem:[#allocation0] sm:$0x1] %vm3, %v2
    %s5 = scalar_lea.vmem %s0, 11
    %v6 = vld [vmem:[%s5] sm:$0x1]
    %7 = vrot.lane.b32.xlu0 %v6, 88
    %v8 = vpop.permute.xlu0 %7
    %vm9 = vcmask 786112
    %10 = vst.msk [vmem:[#allocation0] sm:$0x1] %vm9, %v8
    %s11 = scalar_lea.vmem %s0, 10
    %v12 = vld [vmem:[%s11] sm:$0x1]
    %13 = vrot.lane.b32.xlu0 %v12, 80
    %v14 = vpop.permute.xlu0 %13
    %vm15 = vcmask 720512
    %16 = vst.msk [vmem:[#allocation0] sm:$0x1] %vm15, %v14
    %s17 = scalar_lea.vmem %s0, 9
    %v18 = vld [vmem:[%s17] sm:$0x1]
    %19 = vrot.lane.b32.xlu0 %v18, 72
    %v20 = vpop.permute.xlu0 %19
    %vm21 = vcmask 654912
    %22 = vst.msk [vmem:[#allocation0] sm:$0x1] %vm21, %v20
    %s23 = scalar_lea.vmem %s0, 8
    %v24 = vld [vmem:[%s23] sm:$0x1]
    %25 = vrot.lane.b32.xlu0 %v24, 64
    %v26 = vpop.permute.xlu0 %25
    %vm27 = vcmask 589312
    %28 = vst.msk [vmem:[#allocation0] sm:$0x1] %vm27, %v26
    %s29 = scalar_lea.vmem %s0, 7
    %v30 = vld [vmem:[%s29] sm:$0x1]
    %31 = vrot.lane.b32.xlu0 %v30, 56
    %v32 = vpop.permute.xlu0 %31
    %vm33 = vcmask 523712
    %34 = vst.msk [vmem:[#allocation0] sm:$0x1] %vm33, %v32
    %s35 = scalar_lea.vmem %s0, 6
    %v36 = vld [vmem:[%s35] sm:$0x1]
    %37 = vrot.lane.b32.xlu0 %v36, 48
    %v38 = vpop.permute.xlu0 %37
    %vm39 = vcmask 458112
    %40 = vst.msk [vmem:[#allocation0] sm:$0x1] %vm39, %v38
    %s41 = scalar_lea.vmem %s0, 5
    %v42 = vld [vmem:[%s41] sm:$0x1]
    %43 = vrot.lane.b32.xlu0 %v42, 40
    %v44 = vpop.permute.xlu0 %43
    %vm45 = vcmask 392512
    %46 = vst.msk [vmem:[#allocation0] sm:$0x1] %vm45, %v44
    %s47 = scalar_lea.vmem %s0, 4
    %v48 = vld [vmem:[%s47] sm:$0x1]
    %49 = vrot.lane.b32.xlu0 %v48, 32
    %v50 = vpop.permute.xlu0 %49
    %vm51 = vcmask 326912
    %52 = vst.msk [vmem:[#allocation0] sm:$0x1] %vm51, %v50
    %s53 = scalar_lea.vmem %s0, 3
    %v54 = vld [vmem:[%s53] sm:$0x1]
    %55 = vrot.lane.b32.xlu0 %v54, 24
    %v56 = vpop.permute.xlu0 %55
    %vm57 = vcmask 261312
    %58 = vst.msk [vmem:[#allocation0] sm:$0x1] %vm57, %v56
    %s59 = scalar_lea.vmem %s0, 2
    %v60 = vld [vmem:[%s59] sm:$0x1]
    %61 = vrot.lane.b32.xlu0 %v60, 16
    %v62 = vpop.permute.xlu0 %61
    %vm63 = vcmask 195712
    %64 = vst.msk [vmem:[#allocation0] sm:$0x1] %vm63, %v62
    %s65 = scalar_lea.vmem %s0, 1
    %v66 = vld [vmem:[%s65] sm:$0x1]
    %67 = vrot.lane.b32.xlu0 %v66, 8
    %v68 = vpop.permute.xlu0 %67
    %vm69 = vcmask 130112
    %70 = vst.msk [vmem:[#allocation0] sm:$0x1] %vm69, %v68
    %s72 = ssub.s32 2, 1
    %v73 = vld [vmem:[#allocation0] sm:%s72]
    %s75 = ssub.s32 2, 1
    %76 = vst [vmem:[%s1] sm:%s75] %v73

// kernel: tile.29
$region0: #{tile.29}
  %s0 = inlined_call_operand.vmem [shape: f32[10,8], index: 0, kind: input, shape index: {}]
  %s1 = inlined_call_operand.vmem [shape: f32[1,80], index: 1, kind: output, shape index: {}]
  $region1: #{tile.29} parent=0
    #allocation0 [shape = 'u8[4096]{0}', space=vmem, size = 0x1000, scoped, tag = 'scoped mem for output reshape']
    %v2 = vld [vmem:[%s0] sm:$0x1]
    %vm3 = vcmask 64512
    %4 = vst.msk [vmem:[#allocation0] sm:$0x1] %vm3, %v2
    %s5 = scalar_lea.vmem %s0, 9
    %v6 = vld [vmem:[%s5] sm:$0x1]
    %7 = vrot.lane.b32.xlu0 %v6, 72
    %v8 = vpop.permute.xlu0 %7
    %vm9 = vcmask 654912
    %10 = vst.msk [vmem:[#allocation0] sm:$0x1] %vm9, %v8
    %s11 = scalar_lea.vmem %s0, 8
    %v12 = vld [vmem:[%s11] sm:$0x1]
    %13 = vrot.lane.b32.xlu0 %v12, 64
    %v14 = vpop.permute.xlu0 %13
    %vm15 = vcmask 589312
    %16 = vst.msk [vmem:[#allocation0] sm:$0x1] %vm15, %v14
    %s17 = scalar_lea.vmem %s0, 7
    %v18 = vld [vmem:[%s17] sm:$0x1]
    %19 = vrot.lane.b32.xlu0 %v18, 56
    %v20 = vpop.permute.xlu0 %19
    %vm21 = vcmask 523712
    %22 = vst.msk [vmem:[#allocation0] sm:$0x1] %vm21, %v20
    %s23 = scalar_lea.vmem %s0, 6
    %v24 = vld [vmem:[%s23] sm:$0x1]
    %25 = vrot.lane.b32.xlu0 %v24, 48
    %v26 = vpop.permute.xlu0 %25
    %vm27 = vcmask 458112
    %28 = vst.msk [vmem:[#allocation0] sm:$0x1] %vm27, %v26
    %s29 = scalar_lea.vmem %s0, 5
    %v30 = vld [vmem:[%s29] sm:$0x1]
    %31 = vrot.lane.b32.xlu0 %v30, 40
    %v32 = vpop.permute.xlu0 %31
    %vm33 = vcmask 392512
    %34 = vst.msk [vmem:[#allocation0] sm:$0x1] %vm33, %v32
    %s35 = scalar_lea.vmem %s0, 4
    %v36 = vld [vmem:[%s35] sm:$0x1]
    %37 = vrot.lane.b32.xlu0 %v36, 32
    %v38 = vpop.permute.xlu0 %37
    %vm39 = vcmask 326912
    %40 = vst.msk [vmem:[#allocation0] sm:$0x1] %vm39, %v38
    %s41 = scalar_lea.vmem %s0, 3
    %v42 = vld [vmem:[%s41] sm:$0x1]
    %43 = vrot.lane.b32.xlu0 %v42, 24
    %v44 = vpop.permute.xlu0 %43
    %vm45 = vcmask 261312
    %46 = vst.msk [vmem:[#allocation0] sm:$0x1] %vm45, %v44
    %s47 = scalar_lea.vmem %s0, 2
    %v48 = vld [vmem:[%s47] sm:$0x1]
    %49 = vrot.lane.b32.xlu0 %v48, 16
    %v50 = vpop.permute.xlu0 %49
    %vm51 = vcmask 195712
    %52 = vst.msk [vmem:[#allocation0] sm:$0x1] %vm51, %v50
    %s53 = scalar_lea.vmem %s0, 1
    %v54 = vld [vmem:[%s53] sm:$0x1]
    %55 = vrot.lane.b32.xlu0 %v54, 8
    %v56 = vpop.permute.xlu0 %55
    %vm57 = vcmask 130112
    %58 = vst.msk [vmem:[#allocation0] sm:$0x1] %vm57, %v56
    %s60 = ssub.s32 2, 1
    %v61 = vld [vmem:[#allocation0] sm:%s60]
    %s63 = ssub.s32 2, 1
    %64 = vst [vmem:[%s1] sm:%s63] %v61

// kernel: tile.28
$region0: #{tile.28}
  #allocation0 [shape = 's32[1]{0}', space=sflag, size = 0x4, scoped, tag = 'scoped memory for tile.28']
  %s0 = inlined_call_operand.vmem [shape: f32[8], index: 0, kind: input, shape index: {}]
  %s1 = inlined_call_operand.vmem [shape: f32[10,8], index: 1, kind: output, shape index: {}]
  // Predicated region
  $region2: #{tile.28} parent=0 // pred_check
    _
  $region3: #{tile.28} parent=0 // pred_check_branch
    %3 = sbr.rel (0) target = $region5
  $region4: #{tile.28} parent=0 // pred_region
    _
  $region5: #{tile.28} parent=0 // pred_fallthru
    _
  %v4 = vld [vmem:[%s0] ss:$0 sm:$0xff]
  %5 = vst [vmem:[%s1] sm:$0xff] %v4
  %s6 = scalar_lea.vmem %s1, 8
  %7 = vst [vmem:[%s6] sm:$0xff] %v4

// kernel: cnn_forward.1
$region0: #{cnn_forward.1}
  #allocation0 [shape = 'u32[]', space=smem, size = 0x4, offset = 0x4, fixed_abs, tag = 'smem constant byte address 0x4 - core index']
  #allocation1 [shape = 'u32[72,128]{1,0:T(1,128)}', space=vmem, size = 0x9000, scoped, tag = 'internal scratch']
  %s0 = inlined_call_operand.vmem [shape: f32[8,64], index: 0, kind: input, shape index: {}]
  %s1 = inlined_call_operand.vmem [shape: f32[64,112], index: 1, kind: input, shape index: {}]
  %s2 = inlined_call_operand.vmem [shape: f32[1,112], index: 2, kind: input, shape index: {}]
  %s3 = inlined_call_operand.vmem [shape: f32[112,96], index: 3, kind: input, shape index: {}]
  %s4 = inlined_call_operand.vmem [shape: f32[1,96], index: 4, kind: input, shape index: {}]
  %s5 = inlined_call_operand.vmem [shape: f32[96,80], index: 5, kind: input, shape index: {}]
  %s6 = inlined_call_operand.vmem [shape: f32[1,80], index: 6, kind: input, shape index: {}]
  %s7 = inlined_call_operand.vmem [shape: f32[80,128], index: 7, kind: input, shape index: {}]
  %s8 = inlined_call_operand.vmem [shape: f32[1,128], index: 8, kind: input, shape index: {}]
  %s9 = inlined_call_operand.vmem [shape: f32[8,128], index: 9, kind: output, shape index: {}]
  %s10 = sld [smem:[#allocation0]]
  $region46: #{cnn_forward.1} parent=0
    _
  %s12 = ssub.s32 1, %s10
  %s13 = scalar_select 0, %s12, %s10
  // Predicated region
  $region2: #{cnn_forward.1} parent=0 // pred_check
    _
  $region3: #{cnn_forward.1} parent=0 // pred_check_branch
    %15 = sbr.rel (0) target = $region5
  $region4: #{cnn_forward.1} parent=0 // pred_region
    _
  $region5: #{cnn_forward.1} parent=0 // pred_fallthru
    _
  // Predicated region
  $region6: #{cnn_forward.1} parent=0 // pred_check
    _
  $region7: #{cnn_forward.1} parent=0 // pred_check_branch
    %17 = sbr.rel (0) target = $region9
  $region8: #{cnn_forward.1} parent=0 // pred_region
    _
  $region9: #{cnn_forward.1} parent=0 // pred_fallthru
    _
  // Predicated region
  $region10: #{cnn_forward.1} parent=0 // pred_check
    _
  $region11: #{cnn_forward.1} parent=0 // pred_check_branch
    %19 = sbr.rel (0) target = $region13
  $region12: #{cnn_forward.1} parent=0 // pred_region
    _
  $region13: #{cnn_forward.1} parent=0 // pred_fallthru
    _
  // Predicated region
  $region14: #{cnn_forward.1} parent=0 // pred_check
    _
  $region15: #{cnn_forward.1} parent=0 // pred_check_branch
    %21 = sbr.rel (0) target = $region17
  $region16: #{cnn_forward.1} parent=0 // pred_region
    _
  $region17: #{cnn_forward.1} parent=0 // pred_fallthru
    _
  // Predicated region
  $region18: #{cnn_forward.1} parent=0 // pred_check
    _
  $region19: #{cnn_forward.1} parent=0 // pred_check_branch
    %23 = sbr.rel (0) target = $region21
  $region20: #{cnn_forward.1} parent=0 // pred_region
    _
  $region21: #{cnn_forward.1} parent=0 // pred_fallthru
    _
  // Predicated region
  $region22: #{cnn_forward.1} parent=0 // pred_check
    _
  $region23: #{cnn_forward.1} parent=0 // pred_check_branch
    %25 = sbr.rel (0) target = $region25
  $region24: #{cnn_forward.1} parent=0 // pred_region
    _
  $region25: #{cnn_forward.1} parent=0 // pred_fallthru
    _
  // Predicated region
  $region26: #{cnn_forward.1} parent=0 // pred_check
    _
  $region27: #{cnn_forward.1} parent=0 // pred_check_branch
    %27 = sbr.rel (0) target = $region29
  $region28: #{cnn_forward.1} parent=0 // pred_region
    _
  $region29: #{cnn_forward.1} parent=0 // pred_fallthru
    _
  // Predicated region
  $region30: #{cnn_forward.1} parent=0 // pred_check
    _
  $region31: #{cnn_forward.1} parent=0 // pred_check_branch
    %29 = sbr.rel (0) target = $region33
  $region32: #{cnn_forward.1} parent=0 // pred_region
    _
  $region33: #{cnn_forward.1} parent=0 // pred_fallthru
    _
  // Predicated region
  $region34: #{cnn_forward.1} parent=0 // pred_check
    _
  $region35: #{cnn_forward.1} parent=0 // pred_check_branch
    %31 = sbr.rel (0) target = $region37
  $region36: #{cnn_forward.1} parent=0 // pred_region
    _
  $region37: #{cnn_forward.1} parent=0 // pred_fallthru
    _
  %v32 = vld [vmem:[%s0] sm:$0xff]
  %v33 = vld [vmem:[%s1] sm:$0xff]
  %v34 = vld [vmem:[%s1 + $0x8] sm:$0xff]
  %v35 = vld [vmem:[%s1 + $0x10] sm:$0xff]
  %v36 = vld [vmem:[%s1 + $0x18] sm:$0xff]
  %v37 = vld [vmem:[%s1 + $0x20] sm:$0xff]
  %v38 = vld [vmem:[%s1 + $0x28] sm:$0xff]
  %v39 = vld [vmem:[%s1 + $0x30] sm:$0xff]
  %v40 = vld [vmem:[%s1 + $0x38] sm:$0xff]
  %v41 = vld [vmem:[%s2] sm:$0x1]
  %v43 = vperm.slane %v41, 0
  %vm45 = vcmask 523264
  %v47 = vsel %vm45, %v32, 0
  %49 = vmatpush.msra.mxu0 0.0
  %50 = vmatpush.msra.mxu0 0.0
  %51 = vmatpush.msra.mxu0 0.0
  %52 = vmatpush.msra.mxu0 0.0
  %53 = vmatpush.msra.mxu0 0.0
  %54 = vmatpush.msra.mxu0 0.0
  %55 = vmatpush.msra.mxu0 0.0
  %56 = vmatpush.msra.mxu0 0.0
  %57 = vmatpush.msra.mxu0 %v40
  %58 = vmatpush.msra.mxu0 %v39
  %59 = vmatpush.msra.mxu0 %v38
  %60 = vmatpush.msra.mxu0 %v37
  %61 = vmatpush.msra.mxu0 %v36
  %62 = vmatpush.msra.mxu0 %v35
  %63 = vmatpush.msra.mxu0 %v34
  %64 = vmatpush.msra.mxu0 %v33
  %65 = vmatmul.f32.gmra.mxu0 %v47
  %v66 = vpop.f32.mrf.mxu0
  %v67 = vadd.f32 %v43, %v66
  %68 = vdwg.mxu0
  %v69 = vmax.f32 %v67, 0.0
  %v70 = vld [vmem:[%s3] sm:$0xff]
  %v71 = vld [vmem:[%s3 + $0x8] sm:$0xff]
  %v72 = vld [vmem:[%s3 + $0x10] sm:$0xff]
  %v73 = vld [vmem:[%s3 + $0x18] sm:$0xff]
  %v74 = vld [vmem:[%s3 + $0x20] sm:$0xff]
  %v75 = vld [vmem:[%s3 + $0x28] sm:$0xff]
  %v76 = vld [vmem:[%s3 + $0x30] sm:$0xff]
  %v77 = vld [vmem:[%s3 + $0x38] sm:$0xff]
  %v78 = vld [vmem:[%s3 + $0x40] sm:$0xff]
  %v79 = vld [vmem:[%s3 + $0x48] sm:$0xff]
  %v80 = vld [vmem:[%s3 + $0x50] sm:$0xff]
  %v81 = vld [vmem:[%s3 + $0x58] sm:$0xff]
  %v82 = vld [vmem:[%s3 + $0x60] sm:$0xff]
  %v83 = vld [vmem:[%s3 + $0x68] sm:$0xff]
  %v84 = vld [vmem:[%s4] sm:$0x1]
  %v86 = vperm.slane %v84, 0
  %vm88 = vcmask 916480
  %v90 = vsel %vm88, %v69, 0
  %92 = vmatpush.msra.mxu0 0.0
  %93 = vmatpush.msra.mxu0 0.0
  %94 = vmatpush.msra.mxu0 %v83
  %95 = vmatpush.msra.mxu0 %v82
  %96 = vmatpush.msra.mxu0 %v81
  %97 = vmatpush.msra.mxu0 %v80
  %98 = vmatpush.msra.mxu0 %v79
  %99 = vmatpush.msra.mxu0 %v78
  %100 = vmatpush.msra.mxu0 %v77
  %101 = vmatpush.msra.mxu0 %v76
  %102 = vmatpush.msra.mxu0 %v75
  %103 = vmatpush.msra.mxu0 %v74
  %104 = vmatpush.msra.mxu0 %v73
  %105 = vmatpush.msra.mxu0 %v72
  %106 = vmatpush.msra.mxu0 %v71
  %107 = vmatpush.msra.mxu0 %v70
  %108 = vmatmul.f32.gmra.mxu0 %v90
  %v109 = vpop.f32.mrf.mxu0
  %v110 = vadd.f32 %v86, %v109
  %111 = vdwg.mxu0
  %v112 = vmax.f32 %v110, 0.0
  %v113 = vld [vmem:[%s5] sm:$0xff]
  %v114 = vld [vmem:[%s5 + $0x8] sm:$0xff]
  %v115 = vld [vmem:[%s5 + $0x10] sm:$0xff]
  %v116 = vld [vmem:[%s5 + $0x18] sm:$0xff]
  %v117 = vld [vmem:[%s5 + $0x20] sm:$0xff]
  %v118 = vld [vmem:[%s5 + $0x28] sm:$0xff]
  %v119 = vld [vmem:[%s5 + $0x30] sm:$0xff]
  %v120 = vld [vmem:[%s5 + $0x38] sm:$0xff]
  %v121 = vld [vmem:[%s5 + $0x40] sm:$0xff]
  %v122 = vld [vmem:[%s5 + $0x48] sm:$0xff]
  %v123 = vld [vmem:[%s5 + $0x50] sm:$0xff]
  %v124 = vld [vmem:[%s5 + $0x58] sm:$0xff]
  %v125 = vld [vmem:[%s6] sm:$0x1]
  %v127 = vperm.slane %v125, 0
  %vm129 = vcmask 785408
  %v131 = vsel %vm129, %v112, 0
  %133 = vmatpush.msra.mxu0 0.0
  %134 = vmatpush.msra.mxu0 0.0
  %135 = vmatpush.msra.mxu0 0.0
  %136 = vmatpush.msra.mxu0 0.0
  %137 = vmatpush.msra.mxu0 %v124
  %138 = vmatpush.msra.mxu0 %v123
  %139 = vmatpush.msra.mxu0 %v122
  %140 = vmatpush.msra.mxu0 %v121
  %141 = vmatpush.msra.mxu0 %v120
  %142 = vmatpush.msra.mxu0 %v119
  %143 = vmatpush.msra.mxu0 %v118
  %144 = vmatpush.msra.mxu0 %v117
  %145 = vmatpush.msra.mxu0 %v116
  %146 = vmatpush.msra.mxu0 %v115
  %147 = vmatpush.msra.mxu0 %v114
  %148 = vmatpush.msra.mxu0 %v113
  %149 = vmatmul.f32.gmra.mxu0 %v131
  %v150 = vpop.f32.mrf.mxu0
  %v151 = vadd.f32 %v127, %v150
  %152 = vdwg.mxu0
  %v153 = vmax.f32 %v151, 0.0
  %v154 = vld [vmem:[%s7] sm:$0xff]
  %v155 = vld [vmem:[%s7 + $0x8] sm:$0xff]
  %v156 = vld [vmem:[%s7 + $0x10] sm:$0xff]
  %v157 = vld [vmem:[%s7 + $0x18] sm:$0xff]
  %v158 = vld [vmem:[%s7 + $0x20] sm:$0xff]
  %v159 = vld [vmem:[%s7 + $0x28] sm:$0xff]
  %v160 = vld [vmem:[%s7 + $0x30] sm:$0xff]
  %v161 = vld [vmem:[%s7 + $0x38] sm:$0xff]
  %v162 = vld [vmem:[%s7 + $0x40] sm:$0xff]
  %v163 = vld [vmem:[%s7 + $0x48] sm:$0xff]
  %v164 = vld [vmem:[%s8] sm:$0x1]
  %v166 = vperm.slane %v164, 0
  %vm168 = vcmask 654336
  %v170 = vsel %vm168, %v153, 0
  %172 = vmatpush.msra.mxu0 0.0
  %173 = vmatpush.msra.mxu0 0.0
  %174 = vmatpush.msra.mxu0 0.0
  %175 = vmatpush.msra.mxu0 0.0
  %176 = vmatpush.msra.mxu0 0.0
  %177 = vmatpush.msra.mxu0 0.0
  %178 = vmatpush.msra.mxu0 %v163
  %179 = vmatpush.msra.mxu0 %v162
  %180 = vmatpush.msra.mxu0 %v161
  %181 = vmatpush.msra.mxu0 %v160
  %182 = vmatpush.msra.mxu0 %v159
  %183 = vmatpush.msra.mxu0 %v158
  %184 = vmatpush.msra.mxu0 %v157
  %185 = vmatpush.msra.mxu0 %v156
  %186 = vmatpush.msra.mxu0 %v155
  %187 = vmatpush.msra.mxu0 %v154
  %188 = vmatmul.f32.gmra.mxu0 %v170
  %v189 = vpop.f32.mrf.mxu0
  %v190 = vadd.f32 %v166, %v189
  %191 = vdwg.mxu0
  %192 = vst [vmem:[%s9] sm:$0xff] %v190
  // Predicated region
  $region38: #{cnn_forward.1} parent=0 // pred_check
    _
  $region39: #{cnn_forward.1} parent=0 // pred_check_branch
    %194 = sbr.rel (0) target = $region41
  $region40: #{cnn_forward.1} parent=0 // pred_region
    _
  $region41: #{cnn_forward.1} parent=0 // pred_fallthru
    _
  // Predicated region
  $region42: #{cnn_forward.1} parent=0 // pred_check
    _
  $region43: #{cnn_forward.1} parent=0 // pred_check_branch
    %196 = sbr.rel (0) target = $region45
  $region44: #{cnn_forward.1} parent=0 // pred_region
    _
  $region45: #{cnn_forward.1} parent=0 // pred_fallthru
    _

</llo_original>
